<compile_context>
chip_gen: v5e
topology: v5e:2x2
jax: 0.10.0
libtpu: 0.0.40
codegen_flags: <defaults>
</compile_context>

<pallas_src>
import functools
import math

import jax
import jax.numpy as jnp
from jax.experimental import pallas as pl
from jax.experimental.pallas import tpu as pltpu

_NEG_BIG = -1e30   # finite "minus infinity" (padded rows/cols can never NaN)
_LANE = 128
_SUBLANE = 8


def _round_up(n, m):
    return ((n + m - 1) // m) * m


# --------------------------------------------------------------------------
# Stage 1: fused QKV projection.
# --------------------------------------------------------------------------
def _qkv_proj_kernel(x_ref, w_ref, q_ref, k_ref, v_ref, *, dkp):
    """One (batch-block, row-tile): y = x @ [Wq' | Wk | Wv], split into Q/K/V."""
    bb, tt, d = x_ref.shape
    x2 = x_ref[...].reshape(bb * tt, d)
    y = jnp.dot(x2, w_ref[...], preferred_element_type=jnp.float32)
    y = y.reshape(bb, tt, w_ref.shape[1])
    # Static lane slices at multiples of 128 -> cheap, no cross-tile copies.
    q_ref[...] = y[:, :, :dkp].astype(q_ref.dtype)
    k_ref[...] = y[:, :, dkp:2 * dkp].astype(k_ref.dtype)
    v_ref[...] = y[:, :, 2 * dkp:].astype(v_ref.dtype)


# --------------------------------------------------------------------------
# Stage 2: flash-style causal attention on pre-projected Q/K/V.
# --------------------------------------------------------------------------
def _flash_attn_kernel(q_ref, k_ref, v_ref, o_ref, m_buf, l_buf, acc_buf,
                       *, seq_len, block_q, block_kv):
    qi = pl.program_id(1)
    ki = pl.program_id(2)
    n_kv = pl.num_programs(2)

    @pl.when(ki == 0)
    def _init():
        m_buf[...] = jnp.full_like(m_buf, _NEG_BIG)
        l_buf[...] = jnp.zeros_like(l_buf)
        acc_buf[...] = jnp.zeros_like(acc_buf)

    # Causal tile skip: this KV tile lies strictly in the future of every query
    # row of this Q tile -> contributes nothing (its DMA is also skipped via
    # the clamped index_map in the wrapper).
    q_last_row = qi * block_q + (block_q - 1)
    kv_first_col = ki * block_kv

    @pl.when(kv_first_col <= q_last_row)
    def _compute():
        q = q_ref[...]            # (bb, tq, Dkp)  compute dtype (bf16 default)
        k = k_ref[...]            # (bb, tk, Dkp)
        v = v_ref[...]            # (bb, tk, Dvp)

        # (bb, tq, Dk) x (bb, tk, Dk) -> (bb, tq, tk); contraction over the
        # last dims so no explicit transpose of k is materialized.
        s = jax.lax.dot_general(
            q, k,
            dimension_numbers=(((2,), (2,)), ((0,), (0,))),
            preferred_element_type=jnp.float32)

        # Causal + sequence-padding mask, finite negative fill.
        rows = qi * block_q + jax.lax.broadcasted_iota(jnp.int32, s.shape, 1)
        cols = ki * block_kv + jax.lax.broadcasted_iota(jnp.int32, s.shape, 2)
        masked = jnp.logical_or(cols > rows, cols >= seq_len)
        s = jnp.where(masked, _NEG_BIG, s)

        # Online softmax update; stats stay f32.
        m_prev = m_buf[...]
        m_new = jnp.maximum(m_prev, jnp.max(s, axis=-1, keepdims=True))
        alpha = jnp.exp(m_prev - m_new)
        p = jnp.exp(s - m_new)                                    # f32
        l_buf[...] = alpha * l_buf[...] + jnp.sum(p, axis=-1, keepdims=True)
        pv = jax.lax.dot_general(
            p.astype(v.dtype), v,
            dimension_numbers=(((2,), (1,)), ((0,), (0,))),
            preferred_element_type=jnp.float32)
        acc_buf[...] = alpha * acc_buf[...] + pv
        m_buf[...] = m_new

    @pl.when(ki == n_kv - 1)
    def _finalize():
        # EUP reciprocal + one Newton step: divide off the VALU slot while
        # keeping ~f32 accuracy.
        l = l_buf[...]
        inv = pl.reciprocal(l, approx=True)
        inv = inv * (2.0 - l * inv)
        o_ref[...] = (acc_buf[...] * inv).astype(o_ref.dtype)


# --------------------------------------------------------------------------
# Wrapper.
# --------------------------------------------------------------------------
def single_head_attention(x, wq, wk, wv, *, compute_dtype=jnp.bfloat16,
                          block_q=256, block_kv=256, block_b=8):
    """Causal single-head attention.

    x: (B, T, D); wq/wk: (D, Dk); wv: (D, Dv) -> (B, T, Dv) in x.dtype.
    Weights are the transposed nn.Linear weights (in_dim, out_dim).
    compute_dtype: dtype feeding the MXU (default bf16; softmax math is f32).
    block_kv=128 is recommended on v5e (4x128x128 MXU, HBM-bound).
    """
    orig_dtype = x.dtype
    B, T, D = x.shape
    Dk = wq.shape[1]
    Dv = wv.shape[1]
    cdt = jnp.dtype(compute_dtype) if compute_dtype is not None else x.dtype

    # Lane-dense padding (last dims -> multiples of 128) + sequence padding to
    # the tile sizes.  Zero padding is exact: padded input dims hit zero weight
    # rows, padded output dims / rows / batches are sliced away.
    Dp = _round_up(D, _LANE)
    Dkp = _round_up(Dk, _LANE)
    Dvp = _round_up(Dv, _LANE)
    tile_q = min(block_q, _round_up(T, _SUBLANE))
    tile_kv = min(block_kv, _round_up(T, _SUBLANE))
    if max(tile_q, tile_kv) % min(tile_q, tile_kv) != 0:
        raise ValueError("block_q and block_kv must divide one another")
    Tp = _round_up(T, max(tile_q, tile_kv))
    bb = min(block_b, B)
    Bp = _round_up(B, bb)

    # Fused, pre-scaled, zero-padded QKV weight: [Wq/sqrt(Dk) | Wk | Wv].
    scale = 1.0 / math.sqrt(float(Dk))
    w_fused = jnp.zeros((Dp, 2 * Dkp + Dvp), jnp.float32)
    w_fused = w_fused.at[:D, :Dk].set(wq.astype(jnp.float32) * scale)
    w_fused = w_fused.at[:D, Dkp:Dkp + Dk].set(wk.astype(jnp.float32))
    w_fused = w_fused.at[:D, 2 * Dkp:2 * Dkp + Dv].set(wv.astype(jnp.float32))
    w_fused = w_fused.astype(cdt)

    xp = jnp.zeros((Bp, Tp, Dp), cdt).at[:B, :T, :D].set(x.astype(cdt))

    n_b = Bp // bb
    n_q = Tp // tile_q
    n_kv = Tp // tile_kv

    # ---- Stage 1: project Q, K, V once (hoisted out of the kv loop). ----
    q, k, v = pl.pallas_call(
        functools.partial(_qkv_proj_kernel, dkp=Dkp),
        out_shape=(jax.ShapeDtypeStruct((Bp, Tp, Dkp), cdt),
                   jax.ShapeDtypeStruct((Bp, Tp, Dkp), cdt),
                   jax.ShapeDtypeStruct((Bp, Tp, Dvp), cdt)),
        grid_spec=pltpu.PrefetchScalarGridSpec(
            num_scalar_prefetch=0,
            grid=(n_b, n_q),
            in_specs=[
                pl.BlockSpec((bb, tile_q, Dp), lambda b, t: (b, t, 0)),
                pl.BlockSpec((Dp, 2 * Dkp + Dvp), lambda b, t: (0, 0)),
            ],
            out_specs=[
                pl.BlockSpec((bb, tile_q, Dkp), lambda b, t: (b, t, 0)),
                pl.BlockSpec((bb, tile_q, Dkp), lambda b, t: (b, t, 0)),
                pl.BlockSpec((bb, tile_q, Dvp), lambda b, t: (b, t, 0)),
            ],
        ),
        compiler_params=pltpu.CompilerParams(
            dimension_semantics=("parallel", "parallel")),
    )(xp, w_fused)

    # ---- Stage 2: flash attention. ----
    def q_index_map(b, qi, ki):
        return (b, qi, 0)

    def kv_index_map(b, qi, ki):
        # Clamp so fully-masked (strictly-future) KV tiles repeat the previous
        # block index -> Pallas skips their DMA entirely.
        last_valid = ((qi + 1) * tile_q - 1) // tile_kv
        return (b, jnp.minimum(ki, last_valid), 0)

    kernel = functools.partial(_flash_attn_kernel, seq_len=T,
                               block_q=tile_q, block_kv=tile_kv)

    out = pl.pallas_call(
        kernel,
        out_shape=jax.ShapeDtypeStruct((Bp, Tp, Dvp), orig_dtype),
        grid_spec=pltpu.PrefetchScalarGridSpec(
            num_scalar_prefetch=0,
            grid=(n_b, n_q, n_kv),
            in_specs=[
                pl.BlockSpec((bb, tile_q, Dkp), q_index_map),
                pl.BlockSpec((bb, tile_kv, Dkp), kv_index_map),
                pl.BlockSpec((bb, tile_kv, Dvp), kv_index_map),
            ],
            out_specs=pl.BlockSpec((bb, tile_q, Dvp), q_index_map),
            scratch_shapes=[
                pltpu.VMEM((bb, tile_q, 1), jnp.float32),    # running max
                pltpu.VMEM((bb, tile_q, 1), jnp.float32),    # running sum
                pltpu.VMEM((bb, tile_q, Dvp), jnp.float32),  # output accum
            ],
        ),
        compiler_params=pltpu.CompilerParams(
            dimension_semantics=("parallel", "parallel", "arbitrary"),
            # ~8 MiB footprint at 256 tiles; explicit limit keeps v7x's
            # 64 MiB/TC budget honest and leaves room for deeper buffering.
            vmem_limit_bytes=32 * 1024 * 1024),
    )(q, k, v)

    return out[:B, :T, :Dv].astype(orig_dtype)


# --------------------------------------------------------------------------
# Pure-JAX reference (f32, HIGHEST precision).
# --------------------------------------------------------------------------
def _reference(x, wq, wk, wv):
    hi = jax.lax.Precision.HIGHEST
    q = jnp.dot(x, wq, precision=hi)
    k = jnp.dot(x, wk, precision=hi)
    v = jnp.dot(x, wv, precision=hi)
    dk = wq.shape[1]
    s = jnp.einsum("btd,bsd->bts", q, k, precision=hi) / jnp.sqrt(jnp.float32(dk))
    T = x.shape[1]
    mask = jnp.triu(jnp.ones((T, T), dtype=bool), k=1)
    s = jnp.where(mask[None, :, :], -jnp.inf, s)
    p = jax.nn.softmax(s, axis=-1)
    return jnp.einsum("bts,bsv->btv", p, v, precision=hi)


if __name__ == "__main__":
    # Module config: input_dim=32, output_key_query_dim=32, output_value_dim=32.
    B, T, D = 2, 8, 32
    Dk, Dv = D, D

    key = jax.random.PRNGKey(0)
    kx, kq, kk, kv_, kx2 = jax.random.split(key, 5)

    x = jax.random.normal(kx, (B, T, D), dtype=jnp.float32)

    # nn.Linear(bias=False)-style init U(-1/sqrt(in), 1/sqrt(in)),
    # stored pre-transposed to (in_dim, out_dim).
    bound = 1.0 / math.sqrt(D)
    wq = jax.random.uniform(kq, (D, Dk), minval=-bound, maxval=bound, dtype=jnp.float32)
    wk = jax.random.uniform(kk, (D, Dk), minval=-bound, maxval=bound, dtype=jnp.float32)
    wv = jax.random.uniform(kv_, (D, Dv), minval=-bound, maxval=bound, dtype=jnp.float32)

    ref = _reference(x, wq, wk, wv)

    # 1) Module-sized check (B=2, T=8, D=32), f32 compute path: tight check of
    #    the algorithm (grid collapses to 1x1x1).
    out_f32 = jax.block_until_ready(
        single_head_attention(x, wq, wk, wv, compute_dtype=jnp.float32))
    assert out_f32.shape == (B, T, Dv)
    assert jnp.allclose(out_f32, ref, atol=2e-5, rtol=2e-5), "f32 small-shape mismatch"

    # 2) Default bf16 MXU-feed path (softmax math stays f32 in-kernel).
    out_bf16 = jax.block_until_ready(single_head_attention(x, wq, wk, wv))
    assert out_bf16.shape == (B, T, Dv)
    assert jnp.allclose(out_bf16, ref, atol=5e-2, rtol=5e-2), "bf16 small-shape mismatch"

    # 3) Multi-tile path: T=320 -> Tp=512, multiple q/kv tiles, causal tile
    #    skip + DMA-skip via clamped index_map, padding mask, online softmax.
    T2 = 320
    x2 = jax.random.normal(kx2, (B, T2, D), dtype=jnp.float32)
    ref2 = _reference(x2, wq, wk, wv)
    out2 = jax.block_until_ready(
        single_head_attention(x2, wq, wk, wv, compute_dtype=jnp.float32))
    assert out2.shape == (B, T2, Dv)
    assert jnp.allclose(out2, ref2, atol=1e-4, rtol=1e-4), "f32 tiled mismatch"

    # 4) Asymmetric tiling (v5e-style tq=256, tk=128), default bf16 compute.
    out3 = jax.block_until_ready(
        single_head_attention(x2, wq, wk, wv, block_q=256, block_kv=128))
    assert jnp.allclose(out3, ref2, atol=5e-2, rtol=5e-2), "bf16 asym-tile mismatch"

    print("KERNEL_OK")
</pallas_src>

<mosaic_0001>
module attributes {stable_mosaic.version = 11 : i64} {
  func.func @_qkv_proj_kernel(%arg0: i32, %arg1: i32, %arg2: memref<2x8x128xf32, #tpu.memory_space<vmem>>, %arg3: memref<128x384xf32, #tpu.memory_space<vmem>>, %arg4: memref<2x8x128xf32, #tpu.memory_space<vmem>>, %arg5: memref<2x8x128xf32, #tpu.memory_space<vmem>>, %arg6: memref<2x8x128xf32, #tpu.memory_space<vmem>>) attributes {dimension_semantics = [#tpu.dimension_semantics<parallel>, #tpu.dimension_semantics<parallel>], iteration_bounds = array<i64: 1, 1>, scalar_prefetch = 0 : i64, scratch_operands = 0 : i64, tpu.core_type = #tpu.core_type<tc>, window_params = [{transform_indices = @transform_0, window_bounds = array<i64: 2, 8, 128>}, {pipeline_mode = #tpu.pipeline_mode<synchronous>, transform_indices = @transform_1, window_bounds = array<i64: 128, 384>}, {transform_indices = @transform_2, window_bounds = array<i64: 2, 8, 128>}, {transform_indices = @transform_3, window_bounds = array<i64: 2, 8, 128>}, {transform_indices = @transform_4, window_bounds = array<i64: 2, 8, 128>}]} {
    %c0 = arith.constant 0 : index
    %c0_0 = arith.constant 0 : index
    %c0_1 = arith.constant 0 : index
    %0 = vector.load %arg2[%c0, %c0_0, %c0_1] : memref<2x8x128xf32, #tpu.memory_space<vmem>>, vector<2x8x128xf32>
    %1 = vector.shape_cast %0 : vector<2x8x128xf32> to vector<16x128xf32>
    %c0_2 = arith.constant 0 : index
    %c0_3 = arith.constant 0 : index
    %2 = vector.load %arg3[%c0_2, %c0_3] : memref<128x384xf32, #tpu.memory_space<vmem>>, vector<128x384xf32>
    %cst = arith.constant dense<0.000000e+00> : vector<16x384xf32>
    %3 = tpu.matmul %1, %2, %cst {dimension_numbers = #tpu.dot_dimension_numbers<[1], [0], [0], [1], [0, 0, 1, 1], [], []>} : vector<16x128xf32>, vector<128x384xf32>, vector<16x384xf32> -> vector<16x384xf32>
    %4 = vector.shape_cast %3 : vector<16x384xf32> to vector<2x8x384xf32>
    %5 = vector.extract_strided_slice %4 {offsets = [0, 0, 0], sizes = [2, 8, 128], strides = [1, 1, 1]} : vector<2x8x384xf32> to vector<2x8x128xf32>
    %c0_4 = arith.constant 0 : index
    %c0_5 = arith.constant 0 : index
    %c0_6 = arith.constant 0 : index
    %6 = vector.load %arg4[%c0_4, %c0_5, %c0_6] : memref<2x8x128xf32, #tpu.memory_space<vmem>>, vector<2x8x128xf32>
    tpu.vector_store %arg4[%c0_4, %c0_5, %c0_6], %5 {strides = array<i32>} : memref<2x8x128xf32, #tpu.memory_space<vmem>>, vector<2x8x128xf32>,
    %7 = vector.extract_strided_slice %4 {offsets = [0, 0, 128], sizes = [2, 8, 128], strides = [1, 1, 1]} : vector<2x8x384xf32> to vector<2x8x128xf32>
    %c0_7 = arith.constant 0 : index
    %c0_8 = arith.constant 0 : index
    %c0_9 = arith.constant 0 : index
    %8 = vector.load %arg5[%c0_7, %c0_8, %c0_9] : memref<2x8x128xf32, #tpu.memory_space<vmem>>, vector<2x8x128xf32>
    tpu.vector_store %arg5[%c0_7, %c0_8, %c0_9], %7 {strides = array<i32>} : memref<2x8x128xf32, #tpu.memory_space<vmem>>, vector<2x8x128xf32>,
    %9 = vector.extract_strided_slice %4 {offsets = [0, 0, 256], sizes = [2, 8, 128], strides = [1, 1, 1]} : vector<2x8x384xf32> to vector<2x8x128xf32>
    %c0_10 = arith.constant 0 : index
    %c0_11 = arith.constant 0 : index
    %c0_12 = arith.constant 0 : index
    %10 = vector.load %arg6[%c0_10, %c0_11, %c0_12] : memref<2x8x128xf32, #tpu.memory_space<vmem>>, vector<2x8x128xf32>
    tpu.vector_store %arg6[%c0_10, %c0_11, %c0_12], %9 {strides = array<i32>} : memref<2x8x128xf32, #tpu.memory_space<vmem>>, vector<2x8x128xf32>,
    return
  }
  func.func @transform_0(%arg0: i32, %arg1: i32) -> (i32, i32, i32) {
    %c0_i32 = arith.constant 0 : i32
    %c0_i32_0 = arith.constant 0 : i32
    return %arg0, %arg1, %c0_i32 : i32, i32, i32
  }
  func.func @transform_1(%arg0: i32, %arg1: i32) -> (i32, i32) {
    %c0_i32 = arith.constant 0 : i32
    %c0_i32_0 = arith.constant 0 : i32
    %c0_i32_1 = arith.constant 0 : i32
    return %c0_i32, %c0_i32_0 : i32, i32
  }
  func.func @transform_2(%arg0: i32, %arg1: i32) -> (i32, i32, i32) {
    %c0_i32 = arith.constant 0 : i32
    %c0_i32_0 = arith.constant 0 : i32
    return %arg0, %arg1, %c0_i32 : i32, i32, i32
  }
  func.func @transform_3(%arg0: i32, %arg1: i32) -> (i32, i32, i32) {
    %c0_i32 = arith.constant 0 : i32
    %c0_i32_0 = arith.constant 0 : i32
    return %arg0, %arg1, %c0_i32 : i32, i32, i32
  }
  func.func @transform_4(%arg0: i32, %arg1: i32) -> (i32, i32, i32) {
    %c0_i32 = arith.constant 0 : i32
    %c0_i32_0 = arith.constant 0 : i32
    return %arg0, %arg1, %c0_i32 : i32, i32, i32
  }
}

</mosaic_0001>

<llo_original>
// kernel: tpu_custom_call.1
$region0: #{tpu_custom_call.1}
  #allocation0 [shape = 'u32[]', space=smem, size = 0x4, offset = 0x4, fixed_abs, tag = 'smem constant byte address 0x4 - core index']
  #allocation1 [shape = 'u32[72,128]{1,0:T(1,128)}', space=vmem, size = 0x9000, scoped, tag = 'internal scratch']
  %s0 = inlined_call_operand.hbm [shape: f32[2,8,128], index: 0, kind: input, shape index: {}]
  %s1 = inlined_call_operand.hbm [shape: f32[128,384], index: 1, kind: input, shape index: {}]
  %s2 = inlined_call_operand.hbm [shape: f32[2,8,128], index: 2, kind: output, shape index: {0}]
  %s3 = inlined_call_operand.hbm [shape: f32[2,8,128], index: 3, kind: output, shape index: {1}]
  %s4 = inlined_call_operand.hbm [shape: f32[2,8,128], index: 4, kind: output, shape index: {2}]
  %5 = xla_tuple %s2, %s3, %s4
  %s6 = sld [smem:[#allocation0]]
  $region42: #{tpu_custom_call.1} parent=0
    _
  %s8 = ssub.s32 1, %s6
  %s9 = scalar_select 0, %s8, %s6
  $region1: #{tpu_custom_call.1} parent=0
    #allocation2 [shape = 'u8[8192]{0}', space=vmem, size = 0x2000, scoped, tag = 'input window, operand 0, single buffered']
    #allocation3 [shape = 's32[1]{0}', space=sflag, size = 0x4, scoped, tag = 'scoped memory for tpu_custom_call.1']
    #allocation4 [shape = 's32[1]{0}', space=sflag, size = 0x4, scoped, tag = 'scoped memory for tpu_custom_call.1']
    #allocation5 [shape = 'u8[196608]{0}', space=vmem, size = 0x30000, scoped, tag = 'input window, operand 1, single buffered']
    #allocation6 [shape = 's32[1]{0}', space=sflag, size = 0x4, scoped, tag = 'scoped memory for tpu_custom_call.1']
    #allocation7 [shape = 'u8[8192]{0}', space=vmem, size = 0x2000, scoped, tag = 'output window, operand 0, single buffered']
    #allocation8 [shape = 'u8[8192]{0}', space=vmem, size = 0x2000, scoped, tag = 'output window, operand 1, single buffered']
    #allocation9 [shape = 's32[1]{0}', space=sflag, size = 0x4, scoped, tag = 'scoped memory for tpu_custom_call.1']
    #allocation10 [shape = 'u8[8192]{0}', space=vmem, size = 0x2000, scoped, tag = 'output window, operand 2, single buffered']
    %10 = vsyncpa [#allocation3], 0
    %11 = vsyncpa [#allocation6], 0
    %12 = vsyncpa [#allocation4], 0
    %13 = vsyncpa [#allocation9], 0
    // Predicated region
    $region2: #{tpu_custom_call.1} parent=1 // pred_check
      _
    $region3: #{tpu_custom_call.1} parent=1 // pred_check_branch
      %15 = sbr.rel (0) target = $region5
    $region4: #{tpu_custom_call.1} parent=1 // pred_region
      %17 = vsyncadd [#allocation3], 0
      %s18 = sshll.u32 %s0, 4
      %s19 = int_to_ptr.hbm [resolvable:$true] %s18
      %s20 = sshll.u32 [#allocation2], 4
      %s21 = int_to_ptr.vmem [resolvable:$true] %s20
      %26 = dma.hbm_to_vmem [thread:$0]  %s19, 256, %s21, [#allocation3], 128, 128, 8
    $region5: #{tpu_custom_call.1} parent=1 // pred_fallthru
      _
    // Predicated region
    $region6: #{tpu_custom_call.1} parent=1 // pred_check
      _
    $region7: #{tpu_custom_call.1} parent=1 // pred_check_branch
      %28 = sbr.rel (0) target = $region9
    $region8: #{tpu_custom_call.1} parent=1 // pred_region
      %30 = vsyncadd [#allocation6], 0
      %s31 = sshll.u32 %s1, 4
      %s32 = int_to_ptr.hbm [resolvable:$true] %s31
      %s33 = sshll.u32 [#allocation5], 4
      %s34 = int_to_ptr.vmem [resolvable:$true] %s33
      %39 = dma.hbm_to_vmem [thread:$0]  %s32, 6144, %s34, [#allocation6], 384, 384, 24
    $region9: #{tpu_custom_call.1} parent=1 // pred_fallthru
      _
    // Predicated region
    $region10: #{tpu_custom_call.1} parent=1 // pred_check
      _
    $region11: #{tpu_custom_call.1} parent=1 // pred_check_branch
      %41 = sbr.rel (0) target = $region13
    $region12: #{tpu_custom_call.1} parent=1 // pred_region
      %43 = dma.done [#allocation3], 256
    $region13: #{tpu_custom_call.1} parent=1 // pred_fallthru
      _
    // Predicated region
    $region14: #{tpu_custom_call.1} parent=1 // pred_check
      _
    $region15: #{tpu_custom_call.1} parent=1 // pred_check_branch
      %45 = sbr.rel (0) target = $region17
    $region16: #{tpu_custom_call.1} parent=1 // pred_region
      %47 = dma.done [#allocation6], 6144
    $region17: #{tpu_custom_call.1} parent=1 // pred_fallthru
      _
    %v48 = vld [vmem:[#allocation2] sm:$0xff]
    %v49 = vld [vmem:[#allocation2 + $0x8] sm:$0xff]
    %v50 = vld [vmem:[#allocation5] sm:$0xff]
    %v51 = vld [vmem:[#allocation5 + $0x8] sm:$0xff]
    %v52 = vld [vmem:[#allocation5 + $0x10] sm:$0xff]
    %v53 = vld [vmem:[#allocation5 + $0x18] sm:$0xff]
    %v54 = vld [vmem:[#allocation5 + $0x20] sm:$0xff]
    %v55 = vld [vmem:[#allocation5 + $0x28] sm:$0xff]
    %v56 = vld [vmem:[#allocation5 + $0x30] sm:$0xff]
    %v57 = vld [vmem:[#allocation5 + $0x38] sm:$0xff]
    %v58 = vld [vmem:[#allocation5 + $0x40] sm:$0xff]
    %v59 = vld [vmem:[#allocation5 + $0x48] sm:$0xff]
    %v60 = vld [vmem:[#allocation5 + $0x50] sm:$0xff]
    %v61 = vld [vmem:[#allocation5 + $0x58] sm:$0xff]
    %v62 = vld [vmem:[#allocation5 + $0x60] sm:$0xff]
    %v63 = vld [vmem:[#allocation5 + $0x68] sm:$0xff]
    %v64 = vld [vmem:[#allocation5 + $0x70] sm:$0xff]
    %v65 = vld [vmem:[#allocation5 + $0x78] sm:$0xff]
    %v66 = vld [vmem:[#allocation5 + $0x80] sm:$0xff]
    %v67 = vld [vmem:[#allocation5 + $0x88] sm:$0xff]
    %v68 = vld [vmem:[#allocation5 + $0x90] sm:$0xff]
    %v69 = vld [vmem:[#allocation5 + $0x98] sm:$0xff]
    %v70 = vld [vmem:[#allocation5 + $0xa0] sm:$0xff]
    %v71 = vld [vmem:[#allocation5 + $0xa8] sm:$0xff]
    %v72 = vld [vmem:[#allocation5 + $0xb0] sm:$0xff]
    %v73 = vld [vmem:[#allocation5 + $0xb8] sm:$0xff]
    %v74 = vld [vmem:[#allocation5 + $0xc0] sm:$0xff]
    %v75 = vld [vmem:[#allocation5 + $0xc8] sm:$0xff]
    %v76 = vld [vmem:[#allocation5 + $0xd0] sm:$0xff]
    %v77 = vld [vmem:[#allocation5 + $0xd8] sm:$0xff]
    %v78 = vld [vmem:[#allocation5 + $0xe0] sm:$0xff]
    %v79 = vld [vmem:[#allocation5 + $0xe8] sm:$0xff]
    %v80 = vld [vmem:[#allocation5 + $0xf0] sm:$0xff]
    %v81 = vld [vmem:[#allocation5 + $0xf8] sm:$0xff]
    %v82 = vld [vmem:[#allocation5 + $0x100] sm:$0xff]
    %v83 = vld [vmem:[#allocation5 + $0x108] sm:$0xff]
    %v84 = vld [vmem:[#allocation5 + $0x110] sm:$0xff]
    %v85 = vld [vmem:[#allocation5 + $0x118] sm:$0xff]
    %v86 = vld [vmem:[#allocation5 + $0x120] sm:$0xff]
    %v87 = vld [vmem:[#allocation5 + $0x128] sm:$0xff]
    %v88 = vld [vmem:[#allocation5 + $0x130] sm:$0xff]
    %v89 = vld [vmem:[#allocation5 + $0x138] sm:$0xff]
    %v90 = vld [vmem:[#allocation5 + $0x140] sm:$0xff]
    %v91 = vld [vmem:[#allocation5 + $0x148] sm:$0xff]
    %v92 = vld [vmem:[#allocation5 + $0x150] sm:$0xff]
    %v93 = vld [vmem:[#allocation5 + $0x158] sm:$0xff]
    %v94 = vld [vmem:[#allocation5 + $0x160] sm:$0xff]
    %v95 = vld [vmem:[#allocation5 + $0x168] sm:$0xff]
    %v96 = vld [vmem:[#allocation5 + $0x170] sm:$0xff]
    %v97 = vld [vmem:[#allocation5 + $0x178] sm:$0xff]
    %98 = vmatpush.msra.mxu0 %v95
    %99 = vmatpush.msra.mxu0 %v92
    %100 = vmatpush.msra.mxu0 %v89
    %101 = vmatpush.msra.mxu0 %v86
    %102 = vmatpush.msra.mxu0 %v83
    %103 = vmatpush.msra.mxu0 %v80
    %104 = vmatpush.msra.mxu0 %v77
    %105 = vmatpush.msra.mxu0 %v74
    %106 = vmatpush.msra.mxu0 %v71
    %107 = vmatpush.msra.mxu0 %v68
    %108 = vmatpush.msra.mxu0 %v65
    %109 = vmatpush.msra.mxu0 %v62
    %110 = vmatpush.msra.mxu0 %v59
    %111 = vmatpush.msra.mxu0 %v56
    %112 = vmatpush.msra.mxu0 %v53
    %113 = vmatpush.msra.mxu0 %v50
    %114 = vmatmul.f32.gmra.mxu0 %v48
    %v115 = vpop.f32.mrf.mxu0
    %v116 = vadd.f32 0.0, %v115
    %117 = vmatmul.f32.gmra.mxu0 %v49
    %v118 = vpop.f32.mrf.mxu0
    %v119 = vadd.f32 0.0, %v118
    %120 = vdwg.mxu0
    %121 = vmatpush.msra.mxu0 %v96
    %122 = vmatpush.msra.mxu0 %v93
    %123 = vmatpush.msra.mxu0 %v90
    %124 = vmatpush.msra.mxu0 %v87
    %125 = vmatpush.msra.mxu0 %v84
    %126 = vmatpush.msra.mxu0 %v81
    %127 = vmatpush.msra.mxu0 %v78
    %128 = vmatpush.msra.mxu0 %v75
    %129 = vmatpush.msra.mxu0 %v72
    %130 = vmatpush.msra.mxu0 %v69
    %131 = vmatpush.msra.mxu0 %v66
    %132 = vmatpush.msra.mxu0 %v63
    %133 = vmatpush.msra.mxu0 %v60
    %134 = vmatpush.msra.mxu0 %v57
    %135 = vmatpush.msra.mxu0 %v54
    %136 = vmatpush.msra.mxu0 %v51
    %137 = vmatmul.f32.gmra.mxu0 %v48
    %v138 = vpop.f32.mrf.mxu0
    %v139 = vadd.f32 0.0, %v138
    %140 = vmatmul.f32.gmra.mxu0 %v49
    %v141 = vpop.f32.mrf.mxu0
    %v142 = vadd.f32 0.0, %v141
    %143 = vdwg.mxu0
    %144 = vmatpush.msra.mxu0 %v97
    %145 = vmatpush.msra.mxu0 %v94
    %146 = vmatpush.msra.mxu0 %v91
    %147 = vmatpush.msra.mxu0 %v88
    %148 = vmatpush.msra.mxu0 %v85
    %149 = vmatpush.msra.mxu0 %v82
    %150 = vmatpush.msra.mxu0 %v79
    %151 = vmatpush.msra.mxu0 %v76
    %152 = vmatpush.msra.mxu0 %v73
    %153 = vmatpush.msra.mxu0 %v70
    %154 = vmatpush.msra.mxu0 %v67
    %155 = vmatpush.msra.mxu0 %v64
    %156 = vmatpush.msra.mxu0 %v61
    %157 = vmatpush.msra.mxu0 %v58
    %158 = vmatpush.msra.mxu0 %v55
    %159 = vmatpush.msra.mxu0 %v52
    %160 = vmatmul.f32.gmra.mxu0 %v48
    %v161 = vpop.f32.mrf.mxu0
    %v162 = vadd.f32 0.0, %v161
    %163 = vmatmul.f32.gmra.mxu0 %v49
    %v164 = vpop.f32.mrf.mxu0
    %v165 = vadd.f32 0.0, %v164
    %166 = vdwg.mxu0
    %167 = vst [vmem:[#allocation7] sm:$0xff] %v116
    %168 = vst [vmem:[#allocation7 + $0x8] sm:$0xff] %v119
    %169 = vst [vmem:[#allocation8] sm:$0xff] %v139
    %170 = vst [vmem:[#allocation8 + $0x8] sm:$0xff] %v142
    %171 = vst [vmem:[#allocation10] sm:$0xff] %v162
    %172 = vst [vmem:[#allocation10 + $0x8] sm:$0xff] %v165
    // Predicated region
    $region18: #{tpu_custom_call.1} parent=1 // pred_check
      _
    $region19: #{tpu_custom_call.1} parent=1 // pred_check_branch
      %174 = sbr.rel (0) target = $region21
    $region20: #{tpu_custom_call.1} parent=1 // pred_region
      %176 = vsyncadd [#allocation4], 0
      %s177 = sshll.u32 [#allocation7], 4
      %s178 = int_to_ptr.vmem [resolvable:$true] %s177
      %s179 = sshll.u32 %s2, 4
      %s180 = int_to_ptr.hbm [resolvable:$true] %s179
      %185 = dma.vmem_to_hbm [thread:$0]  %s178, 256, %s180, [#allocation4], 128, 128, 8
    $region21: #{tpu_custom_call.1} parent=1 // pred_fallthru
      _
    // Predicated region
    $region22: #{tpu_custom_call.1} parent=1 // pred_check
      _
    $region23: #{tpu_custom_call.1} parent=1 // pred_check_branch
      %187 = sbr.rel (0) target = $region25
    $region24: #{tpu_custom_call.1} parent=1 // pred_region
      %189 = vsyncadd [#allocation9], 0
      %s190 = sshll.u32 [#allocation8], 4
      %s191 = int_to_ptr.vmem [resolvable:$true] %s190
      %s192 = sshll.u32 %s3, 4
      %s193 = int_to_ptr.hbm [resolvable:$true] %s192
      %198 = dma.vmem_to_hbm [thread:$0]  %s191, 256, %s193, [#allocation9], 128, 128, 8
    $region25: #{tpu_custom_call.1} parent=1 // pred_fallthru
      _
    // Predicated region
    $region26: #{tpu_custom_call.1} parent=1 // pred_check
      _
    $region27: #{tpu_custom_call.1} parent=1 // pred_check_branch
      %200 = sbr.rel (0) target = $region29
    $region28: #{tpu_custom_call.1} parent=1 // pred_region
      %202 = vsyncadd [#allocation9], 0
      %s203 = sshll.u32 [#allocation10], 4
      %s204 = int_to_ptr.vmem [resolvable:$true] %s203
      %s205 = sshll.u32 %s4, 4
      %s206 = int_to_ptr.hbm [resolvable:$true] %s205
      %211 = dma.vmem_to_hbm [thread:$0]  %s204, 256, %s206, [#allocation9], 128, 128, 8
    $region29: #{tpu_custom_call.1} parent=1 // pred_fallthru
      _
    // Predicated region
    $region30: #{tpu_custom_call.1} parent=1 // pred_check
      _
    $region31: #{tpu_custom_call.1} parent=1 // pred_check_branch
      %213 = sbr.rel (0) target = $region33
    $region32: #{tpu_custom_call.1} parent=1 // pred_region
      %215 = dma.done [#allocation4], 256
    $region33: #{tpu_custom_call.1} parent=1 // pred_fallthru
      _
    // Predicated region
    $region34: #{tpu_custom_call.1} parent=1 // pred_check
      _
    $region35: #{tpu_custom_call.1} parent=1 // pred_check_branch
      %217 = sbr.rel (0) target = $region37
    $region36: #{tpu_custom_call.1} parent=1 // pred_region
      %219 = dma.done [#allocation9], 256
    $region37: #{tpu_custom_call.1} parent=1 // pred_fallthru
      _
    // Predicated region
    $region38: #{tpu_custom_call.1} parent=1 // pred_check
      _
    $region39: #{tpu_custom_call.1} parent=1 // pred_check_branch
      %221 = sbr.rel (0) target = $region41
    $region40: #{tpu_custom_call.1} parent=1 // pred_region
      %223 = dma.done [#allocation9], 256
    $region41: #{tpu_custom_call.1} parent=1 // pred_fallthru
      _
    %224 = vsyncpa [#allocation3], 1
    %225 = vsyncpa [#allocation6], 1
    %226 = vsyncpa [#allocation4], 1
    %227 = vsyncpa [#allocation9], 1

</llo_original>
